<compile_context>
chip_gen: v6e
topology: v6e:2x2x1
jax: 0.10.0
libtpu: 0.0.40
codegen_flags: <defaults>
</compile_context>

<pallas_src>
import functools

import jax
import jax.numpy as jnp
from jax.experimental import pallas as pl
from jax.experimental.pallas import tpu as pltpu


def _round_up(x, m):
    return ((x + m - 1) // m) * m


_TILE_M_CAP = 512              # max rows per M tile (prefill); decode uses m_pad directly
_WEIGHT_SLAB_BYTES = 8 << 20   # per-buffer bf16 weight slab target (perf review: v6e/v7x)


def _vmem_capacity_bytes():
    try:
        return int(pltpu.get_tpu_info().vmem_capacity_bytes)
    except Exception:
        return 64 << 20        # conservative fallback (v7x per-TensorCore VMEM)


def _choose_tile_v(d, v):
    """Vocab tile size: as large as the HBM-roofline target allows while the
    double-buffered weight + output + resident-activation slabs fit VMEM on the
    current TPU generation."""
    cap = _vmem_capacity_bytes()
    budget = int(cap * 0.70)                                  # headroom for compiler scratch
    fixed = 2 * _TILE_M_CAP * d * 4 + 8 * d * 4 + (2 << 20)   # dbuf x (f32) + LN params
    remaining = max(budget - fixed, 8 << 20)
    per_row = 2 * (d * 2 + _TILE_M_CAP * 4)   # dbuf bf16 weight row + dbuf f32 out column
    tile_v = remaining // per_row
    tile_v = min(tile_v, _WEIGHT_SLAB_BYTES // (d * 2))       # <= 8 MiB weight per buffer
    tile_v = (tile_v // 256) * 256                            # lane-dense multiples of 256
    tile_v = max(tile_v, 256)
    tile_v = min(tile_v, _round_up(v, 256))
    return int(tile_v)


# ----------------------------------------------------------------------------
# Fused kernel: out_tile = LayerNorm(x_tile) @ W_tile^T   (one (vocab, M) tile per step)
# ----------------------------------------------------------------------------
def ln_logits_kernel(x_ref, gamma_ref, beta_ref, w_ref, out_ref):
    # x_ref:     (tile_m, D)       f32   pre-LN activations
    # gamma_ref: (1, D)            f32
    # beta_ref:  (1, D)            f32
    # w_ref:     (tile_v, D)       bf16  one vocab tile of the tied embedding matrix
    # out_ref:   (tile_m, tile_v)  f32
    x = x_ref[...]
    mean = jnp.mean(x, axis=-1, keepdims=True)
    xc = x - mean
    var = jnp.mean(xc * xc, axis=-1, keepdims=True)
    xn = xc * jax.lax.rsqrt(var + 1e-5)
    xn = xn * gamma_ref[...] + beta_ref[...]
    # Contract the last dim of both operands: bf16 operands on the MXU, f32 accumulation,
    # weight consumed in its natural (vocab, D) layout (no transpose).
    out_ref[...] = jax.lax.dot_general(
        xn.astype(jnp.bfloat16),
        w_ref[...],
        dimension_numbers=(((1,), (1,)), ((), ())),
        preferred_element_type=jnp.float32,
    )


def ln_logits_matmul(x2d, w_padded_bf16, gamma, beta, *, tile_v, n_vocab):
    """logits = LayerNorm(x2d; gamma, beta) @ W^T.

    W is pre-cast to bf16 and pre-padded to a tile_v multiple (prepare_decoder_params).
    Grid = (v_tiles, m_tiles) with M innermost: the weight is streamed from HBM exactly
    once per call; the (small) activation tile is re-read per vocab tile.
    """
    M, D = x2d.shape
    v_pad, dw = w_padded_bf16.shape
    assert dw == D and v_pad % tile_v == 0

    m_pad = _round_up(max(M, 16), 16)          # bf16 vregs pack (16, 128) sublanes
    if m_pad <= _TILE_M_CAP:
        tile_m = m_pad                         # decode / small prefill: single M tile
    else:
        tile_m = _TILE_M_CAP
        m_pad = _round_up(m_pad, tile_m)
    if m_pad != M:
        x2d = jnp.pad(x2d, ((0, m_pad - M), (0, 0)))

    v_tiles = v_pad // tile_v
    m_tiles = m_pad // tile_m

    cap = _vmem_capacity_bytes()
    est = (2 * tile_v * D * 2            # double-buffered weight tiles (bf16)
           + 2 * tile_m * tile_v * 4     # double-buffered output tiles (f32)
           + 2 * tile_m * D * 4          # activation tile (f32)
           + 8 * D * 4                   # gamma / beta
           + (2 << 20))                  # headroom
    vmem_limit = min(int(cap * 0.85), max(2 * est, 32 << 20))
    vmem_limit = int(max(vmem_limit, est + (2 << 20)))

    cost = pl.CostEstimate(
        flops=2 * m_pad * v_pad * D,
        transcendentals=m_pad * v_tiles,                     # rsqrt per row per vocab tile
        bytes_accessed=(v_pad * D * 2                        # weight streamed exactly once
                        + v_tiles * m_pad * D * 4            # x re-read per vocab tile
                        + m_pad * v_pad * 4),                # logits writeback
    )

    out = pl.pallas_call(
        ln_logits_kernel,
        out_shape=jax.ShapeDtypeStruct((m_pad, v_pad), jnp.float32),
        grid=(v_tiles, m_tiles),                              # M innermost
        in_specs=[
            pl.BlockSpec((tile_m, D), lambda j, i: (i, 0)),   # activations
            pl.BlockSpec((1, D), lambda j, i: (0, 0)),        # gamma
            pl.BlockSpec((1, D), lambda j, i: (0, 0)),        # beta
            pl.BlockSpec((tile_v, D), lambda j, i: (j, 0)),   # streamed weight tile
        ],
        out_specs=pl.BlockSpec((tile_m, tile_v), lambda j, i: (i, j)),
        compiler_params=pltpu.CompilerParams(
            # TODO(synk): on v7x verify both TensorCores engage; if a trace shows one idle,
            # switch the vocab axis to pltpu.CORE_PARALLEL.
            dimension_semantics=("parallel", "parallel"),
            vmem_limit_bytes=vmem_limit,
        ),
        cost_estimate=cost,
    )(x2d, gamma.reshape(1, D), beta.reshape(1, D), w_padded_bf16)

    # Only trim dims that were actually padded (avoid a pointless full-logits copy).
    if m_pad != M:
        out = out[:M]
    if v_pad != n_vocab:
        out = out[:, :n_vocab]
    return out


# ----------------------------------------------------------------------------
# One-time weight preparation (outside the decode loop / jit)
# ----------------------------------------------------------------------------
def prepare_decoder_params(params):
    """Cast the tied embedding to bf16 and pad its vocab dim to a tile_v multiple ONCE,
    picking the vocab tile size for the current TPU generation."""
    W = params["token_embedding"]
    V, D = W.shape
    tile_v = _choose_tile_v(D, V)
    v_pad = _round_up(V, tile_v)
    w_bf16 = W.astype(jnp.bfloat16)
    if v_pad != V:
        w_bf16 = jnp.pad(w_bf16, ((0, v_pad - V), (0, 0)))
    prepared = dict(params)
    prepared["token_embedding_bf16"] = w_bf16
    return prepared, tile_v


# ----------------------------------------------------------------------------
# Full forward, mirroring TextDecoderTRT.forward(x, xa)
# ----------------------------------------------------------------------------
@functools.partial(jax.jit, static_argnames=("tile_v",))
def text_decoder_forward(tokens, xa, prepared, *, tile_v):
    B, T = tokens.shape
    W = prepared["token_embedding"]             # (V, D) f32  (gather, as nn.Embedding)
    W_bf16 = prepared["token_embedding_bf16"]   # (V_pad, D) bf16, pre-cast/pre-padded once
    pos = prepared["positional_embedding"]      # (Nctx, D) f32
    gamma = prepared["ln_weight"]               # (D,)
    beta = prepared["ln_bias"]                  # (D,)
    V, D = W.shape

    offset = 0  # the original forward hardcodes offset = 0 (no KV-cache offset)
    tok_emb = W[tokens]                                             # (B, T, D) gather (glue)
    pos_emb = jax.lax.dynamic_slice_in_dim(pos, offset, T, axis=0)  # (T, D)
    x = tok_emb + pos_emb[None, :, :]                               # (B, T, D)

    # TODO(synk): x = engine(x, xa, mask) — opaque torch2trt TRTModule holding the decoder
    # attention blocks; not translatable, treated as identity (xa / mask unused).

    logits2d = ln_logits_matmul(x.reshape(B * T, D), W_bf16, gamma, beta,
                                tile_v=tile_v, n_vocab=V)
    return logits2d.reshape(B, T, V)            # already f32 — no trailing astype


# ----------------------------------------------------------------------------
# Pure-JAX reference (embedding + LN + tied-weight logits) and synthetic params
# ----------------------------------------------------------------------------
def reference_forward(tokens, params):
    W = params["token_embedding"]
    pos = params["positional_embedding"]
    B, T = tokens.shape
    x = W[tokens] + pos[:T][None, :, :]
    mean = x.mean(-1, keepdims=True)
    var = ((x - mean) ** 2).mean(-1, keepdims=True)
    xn = (x - mean) / jnp.sqrt(var + 1e-5)
    xn = xn * params["ln_weight"] + params["ln_bias"]
    return (xn @ W.T).astype(jnp.float32)


def make_params(key, n_vocab, n_ctx, n_state):
    k1, k2, k3, k4 = jax.random.split(key, 4)
    return {
        "token_embedding": 0.02 * jax.random.normal(k1, (n_vocab, n_state), jnp.float32),
        "positional_embedding": 0.01 * jax.random.normal(k2, (n_ctx, n_state), jnp.float32),
        "ln_weight": 1.0 + 0.1 * jax.random.normal(k3, (n_state,), jnp.float32),
        "ln_bias": 0.05 * jax.random.normal(k4, (n_state,), jnp.float32),
    }


if __name__ == "__main__":
    B, T = 2, 8          # batch, decoded token length
    D = 128              # n_state (real Whisper dims 384..1280 are all multiples of 128)
    V = 500              # n_vocab — deliberately NOT 128-aligned to exercise vocab padding
    N_CTX = 16           # max text context (positional embedding rows)
    TA = 16              # audio context length for xa

    key = jax.random.PRNGKey(0)
    kp, kt, ka = jax.random.split(key, 3)

    params = make_params(kp, V, N_CTX, D)
    tokens = jax.random.randint(kt, (B, T), 0, V, dtype=jnp.int32)
    xa = jax.random.normal(ka, (B, TA, D), jnp.float32)

    # Causal mask as registered by the original module (consumed only by the TRT engine).
    mask = jnp.triu(jnp.full((N_CTX, N_CTX), -1e30, jnp.float32), k=1)
    del mask  # unused: engine is opaque (see TODO above)

    # One-time weight prep (bf16 cast + vocab pad + generation-aware tile choice),
    # done OUTSIDE the jitted forward / decode loop.
    prepared, tile_v = prepare_decoder_params(params)

    logits = text_decoder_forward(tokens, xa, prepared, tile_v=tile_v)
    jax.block_until_ready(logits)

    assert logits.shape == (B, T, V) and logits.dtype == jnp.float32

    ref = reference_forward(tokens, params)
    max_err = float(jnp.max(jnp.abs(logits - ref)))
    assert max_err < 5e-2, f"max abs error {max_err} (bf16 weight stream tolerance)"

    print("KERNEL_OK")
</pallas_src>

<mosaic_0001>
module attributes {stable_mosaic.version = 11 : i64} {
  func.func @ln_logits_kernel(%arg0: i32, %arg1: i32, %arg2: memref<16x128xf32, #tpu.memory_space<vmem>>, %arg3: memref<1x128xf32, #tpu.memory_space<vmem>>, %arg4: memref<1x128xf32, #tpu.memory_space<vmem>>, %arg5: memref<512x128xbf16, #tpu.memory_space<vmem>>, %arg6: memref<16x512xf32, #tpu.memory_space<vmem>>) attributes {dimension_semantics = [#tpu.dimension_semantics<parallel>, #tpu.dimension_semantics<parallel>], iteration_bounds = array<i64: 1, 1>, scalar_prefetch = 0 : i64, scratch_operands = 0 : i64, tpu.core_type = #tpu.core_type<tc>, window_params = [{transform_indices = @transform_0, window_bounds = array<i64: 16, 128>}, {pipeline_mode = #tpu.pipeline_mode<synchronous>, transform_indices = @transform_1, window_bounds = array<i64: 1, 128>}, {pipeline_mode = #tpu.pipeline_mode<synchronous>, transform_indices = @transform_2, window_bounds = array<i64: 1, 128>}, {transform_indices = @transform_3, window_bounds = array<i64: 512, 128>}, {transform_indices = @transform_4, window_bounds = array<i64: 16, 512>}]} {
    %c0 = arith.constant 0 : index
    %c0_0 = arith.constant 0 : index
    %0 = vector.load %arg2[%c0, %c0_0] : memref<16x128xf32, #tpu.memory_space<vmem>>, vector<16x128xf32>
    %cst = arith.constant dense<0.000000e+00> : vector<16xf32>
    %1 = vector.multi_reduction <add>, %0, %cst [1] : vector<16x128xf32> to vector<16xf32>
    %2 = vector.shape_cast %1 : vector<16xf32> to vector<16x1xf32>
    %cst_1 = arith.constant 1.280000e+02 : f32
    %3 = vector.broadcast %cst_1 : f32 to vector<16x1xf32>
    %4 = arith.divf %2, %3 : vector<16x1xf32>
    %5 = vector.broadcast %4 : vector<16x1xf32> to vector<16x128xf32>
    %6 = arith.subf %0, %5 : vector<16x128xf32>
    %7 = arith.mulf %6, %6 : vector<16x128xf32>
    %cst_2 = arith.constant dense<0.000000e+00> : vector<16xf32>
    %8 = vector.multi_reduction <add>, %7, %cst_2 [1] : vector<16x128xf32> to vector<16xf32>
    %9 = vector.shape_cast %8 : vector<16xf32> to vector<16x1xf32>
    %cst_3 = arith.constant 1.280000e+02 : f32
    %10 = vector.broadcast %cst_3 : f32 to vector<16x1xf32>
    %11 = arith.divf %9, %10 : vector<16x1xf32>
    %cst_4 = arith.constant 9.99999974E-6 : f32
    %12 = vector.broadcast %cst_4 : f32 to vector<16x1xf32>
    %13 = arith.addf %11, %12 : vector<16x1xf32>
    %14 = math.rsqrt %13 : vector<16x1xf32>
    %15 = vector.broadcast %14 : vector<16x1xf32> to vector<16x128xf32>
    %16 = arith.mulf %6, %15 : vector<16x128xf32>
    %c0_5 = arith.constant 0 : index
    %c0_6 = arith.constant 0 : index
    %17 = vector.load %arg3[%c0_5, %c0_6] : memref<1x128xf32, #tpu.memory_space<vmem>>, vector<1x128xf32>
    %18 = vector.broadcast %17 : vector<1x128xf32> to vector<16x128xf32>
    %19 = arith.mulf %16, %18 : vector<16x128xf32>
    %c0_7 = arith.constant 0 : index
    %c0_8 = arith.constant 0 : index
    %20 = vector.load %arg4[%c0_7, %c0_8] : memref<1x128xf32, #tpu.memory_space<vmem>>, vector<1x128xf32>
    %21 = vector.broadcast %20 : vector<1x128xf32> to vector<16x128xf32>
    %22 = arith.addf %19, %21 : vector<16x128xf32>
    %23 = arith.truncf %22 : vector<16x128xf32> to vector<16x128xbf16>
    %c0_9 = arith.constant 0 : index
    %c0_10 = arith.constant 0 : index
    %24 = vector.load %arg5[%c0_9, %c0_10] : memref<512x128xbf16, #tpu.memory_space<vmem>>, vector<512x128xbf16>
    %cst_11 = arith.constant dense<0.000000e+00> : vector<16x512xf32>
    %25 = tpu.matmul %23, %24, %cst_11 {dimension_numbers = #tpu.dot_dimension_numbers<[1], [1], [0], [0], [0, 0, 1, 0], [], []>} : vector<16x128xbf16>, vector<512x128xbf16>, vector<16x512xf32> -> vector<16x512xf32>
    %c0_12 = arith.constant 0 : index
    %c0_13 = arith.constant 0 : index
    %26 = vector.load %arg6[%c0_12, %c0_13] : memref<16x512xf32, #tpu.memory_space<vmem>>, vector<16x512xf32>
    tpu.vector_store %arg6[%c0_12, %c0_13], %25 {strides = array<i32>} : memref<16x512xf32, #tpu.memory_space<vmem>>, vector<16x512xf32>,
    return
  }
  func.func @transform_0(%arg0: i32, %arg1: i32) -> (i32, i32) {
    %c0_i32 = arith.constant 0 : i32
    %c0_i32_0 = arith.constant 0 : i32
    return %arg1, %c0_i32 : i32, i32
  }
  func.func @transform_1(%arg0: i32, %arg1: i32) -> (i32, i32) {
    %c0_i32 = arith.constant 0 : i32
    %c0_i32_0 = arith.constant 0 : i32
    %c0_i32_1 = arith.constant 0 : i32
    return %c0_i32, %c0_i32_0 : i32, i32
  }
  func.func @transform_2(%arg0: i32, %arg1: i32) -> (i32, i32) {
    %c0_i32 = arith.constant 0 : i32
    %c0_i32_0 = arith.constant 0 : i32
    %c0_i32_1 = arith.constant 0 : i32
    return %c0_i32, %c0_i32_0 : i32, i32
  }
  func.func @transform_3(%arg0: i32, %arg1: i32) -> (i32, i32) {
    %c0_i32 = arith.constant 0 : i32
    %c0_i32_0 = arith.constant 0 : i32
    return %arg0, %c0_i32 : i32, i32
  }
  func.func @transform_4(%arg0: i32, %arg1: i32) -> (i32, i32) {
    %c0_i32 = arith.constant 0 : i32
    return %arg1, %arg0 : i32, i32
  }
}

</mosaic_0001>

<llo_original>
// kernel: text_decoder_forward.1
$region0: #{text_decoder_forward.1}
  #allocation0 [shape = 'u32[]', space=smem, size = 0x4, offset = 0x4, fixed_abs, tag = 'smem constant byte address 0x4 - core index']
  #allocation1 [shape = 'u32[144,128]{1,0:T(1,128)}', space=vmem, size = 0x12000, scoped, tag = 'internal scratch']
  %s0 = inlined_call_operand.vmem [shape: f32[16,128], index: 0, kind: input, shape index: {}]
  %s1 = inlined_call_operand.vmem [shape: f32[1,128], index: 1, kind: input, shape index: {}]
  %s2 = inlined_call_operand.vmem [shape: f32[1,128], index: 2, kind: input, shape index: {}]
  %s3 = inlined_call_operand.hbm [shape: bf16[512,128], index: 3, kind: input, shape index: {}]
  %s4 = inlined_call_operand.vmem [shape: f32[16,512], index: 4, kind: output, shape index: {}]
  %s5 = sld [smem:[#allocation0]]
  $region30: #{text_decoder_forward.1} parent=0
    _
  %s7 = ssub.s32 1, %s5
  %s8 = scalar_select 0, %s7, %s5
  $region1: #{text_decoder_forward.1} parent=0
    #allocation2 [shape = 'u8[131072]{0}', space=vmem, size = 0x20000, scoped, tag = 'input window, operand 3, single buffered']
    #allocation3 [shape = 's32[1]{0}', space=sflag, size = 0x4, scoped, tag = 'scoped memory for text_decoder_forward.1']
    %9 = vsyncpa [#allocation3], 0
    // Predicated region
    $region2: #{text_decoder_forward.1} parent=1 // pred_check
      _
    $region3: #{text_decoder_forward.1} parent=1 // pred_check_branch
      %11 = sbr.rel (0) target = $region5
    $region4: #{text_decoder_forward.1} parent=1 // pred_region
      _
    $region5: #{text_decoder_forward.1} parent=1 // pred_fallthru
      _
    // Predicated region
    $region6: #{text_decoder_forward.1} parent=1 // pred_check
      _
    $region7: #{text_decoder_forward.1} parent=1 // pred_check_branch
      %13 = sbr.rel (0) target = $region9
    $region8: #{text_decoder_forward.1} parent=1 // pred_region
      _
    $region9: #{text_decoder_forward.1} parent=1 // pred_fallthru
      _
    // Predicated region
    $region10: #{text_decoder_forward.1} parent=1 // pred_check
      _
    $region11: #{text_decoder_forward.1} parent=1 // pred_check_branch
      %15 = sbr.rel (0) target = $region13
    $region12: #{text_decoder_forward.1} parent=1 // pred_region
      _
    $region13: #{text_decoder_forward.1} parent=1 // pred_fallthru
      _
    // Predicated region
    $region14: #{text_decoder_forward.1} parent=1 // pred_check
      _
    $region15: #{text_decoder_forward.1} parent=1 // pred_check_branch
      %17 = sbr.rel (0) target = $region17
    $region16: #{text_decoder_forward.1} parent=1 // pred_region
      %s19 = ssub.s32 4096, 4096
      %20 = vsyncadd [#allocation3], %s19
      %s21 = sshll.u32 [#allocation2], 4
      %s22 = int_to_ptr.vmem [resolvable:$true] %s21
      %27 = dma.hbm_to_vmem [thread:$0]  %s3, 4096, %s22, [#allocation3], 64, 64, 4
    $region17: #{text_decoder_forward.1} parent=1 // pred_fallthru
      _
    // Predicated region
    $region18: #{text_decoder_forward.1} parent=1 // pred_check
      _
    $region19: #{text_decoder_forward.1} parent=1 // pred_check_branch
      %29 = sbr.rel (0) target = $region21
    $region20: #{text_decoder_forward.1} parent=1 // pred_region
      %30 = dma.done [#allocation3], 4096
    $region21: #{text_decoder_forward.1} parent=1 // pred_fallthru
      _
    %v32 = vld [vmem:[%s0] sm:$0xff]
    %v33 = vld [vmem:[%s0 + $0x8] sm:$0xff]
    %34 = vadd.xlane.f32.xlu0 %v32
    %v35 = vpop.xlane.xlu0 %34
    %36 = vadd.xlane.f32.xlu0 %v33
    %v37 = vpop.xlane.xlu0 %36
    %v38 = vrcp.pop 128.0
    %v39 = vmul.f32 %v35, %v38
    %v40 = vmul.f32 %v37, %v38
    %v41 = vsub.f32 %v32, %v39
    %v42 = vsub.f32 %v33, %v40
    %v43 = vmul.f32 %v41, %v41
    %v44 = vmul.f32 %v42, %v42
    %45 = vadd.xlane.f32.xlu0 %v43
    %v46 = vpop.xlane.xlu0 %45
    %47 = vadd.xlane.f32.xlu0 %v44
    %v48 = vpop.xlane.xlu0 %47
    %v49 = vmul.f32 %v46, %v38
    %v50 = vmul.f32 %v48, %v38
    %v51 = vadd.f32 %v49, 1e-05
    %v52 = vadd.f32 %v50, 1e-05
    %v53 = vrsqrt.pop %v51
    %v54 = vrsqrt.pop %v52
    %v55 = vmul.f32 %v41, %v53
    %v56 = vmul.f32 %v42, %v54
    %v57 = vld [vmem:[%s1] sm:$0x1]
    %v59 = vlaneseq
    %v60 = vshrl.u32 %v59, 7
    %v61 = vsub.s32 0, %v60
    %v62 = vrot.slane %v57, %v61
    %v64 = vmul.f32 %v55, %v62
    %v65 = vmul.f32 %v56, %v62
    %v66 = vld [vmem:[%s2] sm:$0x1]
    %v68 = vlaneseq
    %v69 = vshrl.u32 %v68, 7
    %v70 = vsub.s32 0, %v69
    %v71 = vrot.slane %v66, %v70
    %v73 = vadd.f32 %v64, %v71
    %v74 = vadd.f32 %v65, %v71
    %v75 = vpack.c.bf16 %v74, %v73
    %v76 = vld [vmem:[#allocation2] sm:$0xf]
    %v77 = vld [vmem:[#allocation2 + $0x4] sm:$0xf]
    %v78 = vld [vmem:[#allocation2 + $0x8] sm:$0xf]
    %v79 = vld [vmem:[#allocation2 + $0xc] sm:$0xf]
    %v80 = vld [vmem:[#allocation2 + $0x10] sm:$0xf]
    %v81 = vld [vmem:[#allocation2 + $0x14] sm:$0xf]
    %v82 = vld [vmem:[#allocation2 + $0x18] sm:$0xf]
    %v83 = vld [vmem:[#allocation2 + $0x1c] sm:$0xf]
    %v84 = vld [vmem:[#allocation2 + $0x20] sm:$0xf]
    %v85 = vld [vmem:[#allocation2 + $0x24] sm:$0xf]
    %v86 = vld [vmem:[#allocation2 + $0x28] sm:$0xf]
    %v87 = vld [vmem:[#allocation2 + $0x2c] sm:$0xf]
    %v88 = vld [vmem:[#allocation2 + $0x30] sm:$0xf]
    %v89 = vld [vmem:[#allocation2 + $0x34] sm:$0xf]
    %v90 = vld [vmem:[#allocation2 + $0x38] sm:$0xf]
    %v91 = vld [vmem:[#allocation2 + $0x3c] sm:$0xf]
    %v92 = vld [vmem:[#allocation2 + $0x40] sm:$0xf]
    %v93 = vld [vmem:[#allocation2 + $0x44] sm:$0xf]
    %v94 = vld [vmem:[#allocation2 + $0x48] sm:$0xf]
    %v95 = vld [vmem:[#allocation2 + $0x4c] sm:$0xf]
    %v96 = vld [vmem:[#allocation2 + $0x50] sm:$0xf]
    %v97 = vld [vmem:[#allocation2 + $0x54] sm:$0xf]
    %v98 = vld [vmem:[#allocation2 + $0x58] sm:$0xf]
    %v99 = vld [vmem:[#allocation2 + $0x5c] sm:$0xf]
    %v100 = vld [vmem:[#allocation2 + $0x60] sm:$0xf]
    %v101 = vld [vmem:[#allocation2 + $0x64] sm:$0xf]
    %v102 = vld [vmem:[#allocation2 + $0x68] sm:$0xf]
    %v103 = vld [vmem:[#allocation2 + $0x6c] sm:$0xf]
    %v104 = vld [vmem:[#allocation2 + $0x70] sm:$0xf]
    %v105 = vld [vmem:[#allocation2 + $0x74] sm:$0xf]
    %v106 = vld [vmem:[#allocation2 + $0x78] sm:$0xf]
    %v107 = vld [vmem:[#allocation2 + $0x7c] sm:$0xf]
    %v108 = vld [vmem:[#allocation2 + $0x80] sm:$0xf]
    %v109 = vld [vmem:[#allocation2 + $0x84] sm:$0xf]
    %v110 = vld [vmem:[#allocation2 + $0x88] sm:$0xf]
    %v111 = vld [vmem:[#allocation2 + $0x8c] sm:$0xf]
    %v112 = vld [vmem:[#allocation2 + $0x90] sm:$0xf]
    %v113 = vld [vmem:[#allocation2 + $0x94] sm:$0xf]
    %v114 = vld [vmem:[#allocation2 + $0x98] sm:$0xf]
    %v115 = vld [vmem:[#allocation2 + $0x9c] sm:$0xf]
    %v116 = vld [vmem:[#allocation2 + $0xa0] sm:$0xf]
    %v117 = vld [vmem:[#allocation2 + $0xa4] sm:$0xf]
    %v118 = vld [vmem:[#allocation2 + $0xa8] sm:$0xf]
    %v119 = vld [vmem:[#allocation2 + $0xac] sm:$0xf]
    %v120 = vld [vmem:[#allocation2 + $0xb0] sm:$0xf]
    %v121 = vld [vmem:[#allocation2 + $0xb4] sm:$0xf]
    %v122 = vld [vmem:[#allocation2 + $0xb8] sm:$0xf]
    %v123 = vld [vmem:[#allocation2 + $0xbc] sm:$0xf]
    %v124 = vld [vmem:[#allocation2 + $0xc0] sm:$0xf]
    %v125 = vld [vmem:[#allocation2 + $0xc4] sm:$0xf]
    %v126 = vld [vmem:[#allocation2 + $0xc8] sm:$0xf]
    %v127 = vld [vmem:[#allocation2 + $0xcc] sm:$0xf]
    %v128 = vld [vmem:[#allocation2 + $0xd0] sm:$0xf]
    %v129 = vld [vmem:[#allocation2 + $0xd4] sm:$0xf]
    %v130 = vld [vmem:[#allocation2 + $0xd8] sm:$0xf]
    %v131 = vld [vmem:[#allocation2 + $0xdc] sm:$0xf]
    %v132 = vld [vmem:[#allocation2 + $0xe0] sm:$0xf]
    %v133 = vld [vmem:[#allocation2 + $0xe4] sm:$0xf]
    %v134 = vld [vmem:[#allocation2 + $0xe8] sm:$0xf]
    %v135 = vld [vmem:[#allocation2 + $0xec] sm:$0xf]
    %v136 = vld [vmem:[#allocation2 + $0xf0] sm:$0xf]
    %v137 = vld [vmem:[#allocation2 + $0xf4] sm:$0xf]
    %v138 = vld [vmem:[#allocation2 + $0xf8] sm:$0xf]
    %v139 = vld [vmem:[#allocation2 + $0xfc] sm:$0xf]
    %v204 = vunpack.c.l.b16 %v76
    %v205 = vunpack.c.l.b16 %v77
    %v206 = vunpack.c.l.b16 %v78
    %v207 = vunpack.c.l.b16 %v79
    %v208 = vunpack.c.l.b16 %v80
    %v209 = vunpack.c.l.b16 %v81
    %v210 = vunpack.c.l.b16 %v82
    %v211 = vunpack.c.l.b16 %v83
    %v212 = vunpack.c.l.b16 %v84
    %v213 = vunpack.c.l.b16 %v85
    %v214 = vunpack.c.l.b16 %v86
    %v215 = vunpack.c.l.b16 %v87
    %v216 = vunpack.c.l.b16 %v88
    %v217 = vunpack.c.l.b16 %v89
    %v218 = vunpack.c.l.b16 %v90
    %v219 = vunpack.c.l.b16 %v91
    %v220 = vunpack.c.l.b16 %v92
    %v221 = vunpack.c.l.b16 %v93
    %v222 = vunpack.c.l.b16 %v94
    %v223 = vunpack.c.l.b16 %v95
    %v224 = vunpack.c.l.b16 %v96
    %v225 = vunpack.c.l.b16 %v97
    %v226 = vunpack.c.l.b16 %v98
    %v227 = vunpack.c.l.b16 %v99
    %v228 = vunpack.c.l.b16 %v100
    %v229 = vunpack.c.l.b16 %v101
    %v230 = vunpack.c.l.b16 %v102
    %v231 = vunpack.c.l.b16 %v103
    %v232 = vunpack.c.l.b16 %v104
    %v233 = vunpack.c.l.b16 %v105
    %v234 = vunpack.c.l.b16 %v106
    %v235 = vunpack.c.l.b16 %v107
    %v236 = vunpack.c.l.b16 %v108
    %v237 = vunpack.c.l.b16 %v109
    %v238 = vunpack.c.l.b16 %v110
    %v239 = vunpack.c.l.b16 %v111
    %v240 = vunpack.c.l.b16 %v112
    %v241 = vunpack.c.l.b16 %v113
    %v242 = vunpack.c.l.b16 %v114
    %v243 = vunpack.c.l.b16 %v115
    %v244 = vunpack.c.l.b16 %v116
    %v245 = vunpack.c.l.b16 %v117
    %v246 = vunpack.c.l.b16 %v118
    %v247 = vunpack.c.l.b16 %v119
    %v248 = vunpack.c.l.b16 %v120
    %v249 = vunpack.c.l.b16 %v121
    %v250 = vunpack.c.l.b16 %v122
    %v251 = vunpack.c.l.b16 %v123
    %v252 = vunpack.c.l.b16 %v124
    %v253 = vunpack.c.l.b16 %v125
    %v254 = vunpack.c.l.b16 %v126
    %v255 = vunpack.c.l.b16 %v127
    %v256 = vunpack.c.l.b16 %v128
    %v257 = vunpack.c.l.b16 %v129
    %v258 = vunpack.c.l.b16 %v130
    %v259 = vunpack.c.l.b16 %v131
    %v260 = vunpack.c.l.b16 %v132
    %v261 = vunpack.c.l.b16 %v133
    %v262 = vunpack.c.l.b16 %v134
    %v263 = vunpack.c.l.b16 %v135
    %v264 = vunpack.c.l.b16 %v136
    %v265 = vunpack.c.l.b16 %v137
    %v266 = vunpack.c.l.b16 %v138
    %v267 = vunpack.c.l.b16 %v139
    %v268 = vpack.c.b16 %v205, %v204
    %v269 = vpack.c.b16 %v207, %v206
    %v270 = vpack.c.b16 %v209, %v208
    %v271 = vpack.c.b16 %v211, %v210
    %v272 = vpack.c.b16 %v213, %v212
    %v273 = vpack.c.b16 %v215, %v214
    %v274 = vpack.c.b16 %v217, %v216
    %v275 = vpack.c.b16 %v219, %v218
    %v276 = vpack.c.b16 %v221, %v220
    %v277 = vpack.c.b16 %v223, %v222
    %v278 = vpack.c.b16 %v225, %v224
    %v279 = vpack.c.b16 %v227, %v226
    %v280 = vpack.c.b16 %v229, %v228
    %v281 = vpack.c.b16 %v231, %v230
    %v282 = vpack.c.b16 %v233, %v232
    %v283 = vpack.c.b16 %v235, %v234
    %v284 = vpack.c.b16 %v237, %v236
    %v285 = vpack.c.b16 %v239, %v238
    %v286 = vpack.c.b16 %v241, %v240
    %v287 = vpack.c.b16 %v243, %v242
    %v288 = vpack.c.b16 %v245, %v244
    %v289 = vpack.c.b16 %v247, %v246
    %v290 = vpack.c.b16 %v249, %v248
    %v291 = vpack.c.b16 %v251, %v250
    %v292 = vpack.c.b16 %v253, %v252
    %v293 = vpack.c.b16 %v255, %v254
    %v294 = vpack.c.b16 %v257, %v256
    %v295 = vpack.c.b16 %v259, %v258
    %v296 = vpack.c.b16 %v261, %v260
    %v297 = vpack.c.b16 %v263, %v262
    %v298 = vpack.c.b16 %v265, %v264
    %v299 = vpack.c.b16 %v267, %v266
    %332 = vmatprep.subr.bf16.mxu0 0
    %333 = vmatpush1.bf16.xpose.msra.mxu0 %v275
    %334 = vmatprep.subr.bf16.mxu0 0
    %335 = vmatpush1.bf16.xpose.msra.mxu0 %v274
    %336 = vmatprep.subr.bf16.mxu0 0
    %337 = vmatpush1.bf16.xpose.msra.mxu0 %v273
    %338 = vmatprep.subr.bf16.mxu0 0
    %339 = vmatpush1.bf16.xpose.msra.mxu0 %v272
    %340 = vmatprep.subr.bf16.mxu0 0
    %341 = vmatpush1.bf16.xpose.msra.mxu0 %v271
    %342 = vmatprep.subr.bf16.mxu0 0
    %343 = vmatpush1.bf16.xpose.msra.mxu0 %v270
    %344 = vmatprep.subr.bf16.mxu0 0
    %345 = vmatpush1.bf16.xpose.msra.mxu0 %v269
    %346 = vmatprep.subr.bf16.mxu0 0
    %347 = vmatpush1.bf16.xpose.msra.mxu0 %v268
    %348 = vmatprep.subr.bf16.mxu0 0
    %349 = vmatpush2.bf16.xpose.msra.mxu0 %v283
    %350 = vmatprep.subr.bf16.mxu0 0
    %351 = vmatpush2.bf16.xpose.msra.mxu0 %v282
    %352 = vmatprep.subr.bf16.mxu0 0
    %353 = vmatpush2.bf16.xpose.msra.mxu0 %v281
    %354 = vmatprep.subr.bf16.mxu0 0
    %355 = vmatpush2.bf16.xpose.msra.mxu0 %v280
    %356 = vmatprep.subr.bf16.mxu0 0
    %357 = vmatpush2.bf16.xpose.msra.mxu0 %v279
    %358 = vmatprep.subr.bf16.mxu0 0
    %359 = vmatpush2.bf16.xpose.msra.mxu0 %v278
    %360 = vmatprep.subr.bf16.mxu0 0
    %361 = vmatpush2.bf16.xpose.msra.mxu0 %v277
    %362 = vmatprep.subr.bf16.mxu0 0
    %363 = vmatpush2.bf16.xpose.msra.mxu0 %v276
    %364 = vmatprep.mubr.bf16.mxu0 0
    %365 = vmatmul.mubr.bf16.gmra.mxu0 %v75
    %v366 = vpop.f32.mrf.mxu0
    %v367 = vadd.f32 0.0, %v366
    %v368 = vpop.f32.mrf.mxu0
    %v369 = vadd.f32 0.0, %v368
    %v370 = vpop.f32.mrf.mxu0
    %v371 = vadd.f32 0.0, %v370
    %v372 = vpop.f32.mrf.mxu0
    %v373 = vadd.f32 0.0, %v372
    %374 = vdwg.mxu0
    %375 = vmatprep.subr.bf16.mxu0 0
    %376 = vmatpush1.bf16.xpose.msra.mxu0 %v291
    %377 = vmatprep.subr.bf16.mxu0 0
    %378 = vmatpush1.bf16.xpose.msra.mxu0 %v290
    %379 = vmatprep.subr.bf16.mxu0 0
    %380 = vmatpush1.bf16.xpose.msra.mxu0 %v289
    %381 = vmatprep.subr.bf16.mxu0 0
    %382 = vmatpush1.bf16.xpose.msra.mxu0 %v288
    %383 = vmatprep.subr.bf16.mxu0 0
    %384 = vmatpush1.bf16.xpose.msra.mxu0 %v287
    %385 = vmatprep.subr.bf16.mxu0 0
    %386 = vmatpush1.bf16.xpose.msra.mxu0 %v286
    %387 = vmatprep.subr.bf16.mxu0 0
    %388 = vmatpush1.bf16.xpose.msra.mxu0 %v285
    %389 = vmatprep.subr.bf16.mxu0 0
    %390 = vmatpush1.bf16.xpose.msra.mxu0 %v284
    %391 = vmatprep.subr.bf16.mxu0 0
    %392 = vmatpush2.bf16.xpose.msra.mxu0 %v299
    %393 = vmatprep.subr.bf16.mxu0 0
    %394 = vmatpush2.bf16.xpose.msra.mxu0 %v298
    %395 = vmatprep.subr.bf16.mxu0 0
    %396 = vmatpush2.bf16.xpose.msra.mxu0 %v297
    %397 = vmatprep.subr.bf16.mxu0 0
    %398 = vmatpush2.bf16.xpose.msra.mxu0 %v296
    %399 = vmatprep.subr.bf16.mxu0 0
    %400 = vmatpush2.bf16.xpose.msra.mxu0 %v295
    %401 = vmatprep.subr.bf16.mxu0 0
    %402 = vmatpush2.bf16.xpose.msra.mxu0 %v294
    %403 = vmatprep.subr.bf16.mxu0 0
    %404 = vmatpush2.bf16.xpose.msra.mxu0 %v293
    %405 = vmatprep.subr.bf16.mxu0 0
    %406 = vmatpush2.bf16.xpose.msra.mxu0 %v292
    %407 = vmatprep.mubr.bf16.mxu0 0
    %408 = vmatmul.mubr.bf16.gmra.mxu0 %v75
    %v409 = vpop.f32.mrf.mxu0
    %v410 = vadd.f32 0.0, %v409
    %v411 = vpop.f32.mrf.mxu0
    %v412 = vadd.f32 0.0, %v411
    %v413 = vpop.f32.mrf.mxu0
    %v414 = vadd.f32 0.0, %v413
    %v415 = vpop.f32.mrf.mxu0
    %v416 = vadd.f32 0.0, %v415
    %417 = vdwg.mxu0
    %418 = vst [vmem:[%s4] sm:$0xff] %v367
    %419 = vst [vmem:[%s4 + $0x8] sm:$0xff] %v369
    %420 = vst [vmem:[%s4 + $0x10] sm:$0xff] %v410
    %421 = vst [vmem:[%s4 + $0x18] sm:$0xff] %v412
    %422 = vst [vmem:[%s4 + $0x20] sm:$0xff] %v371
    %423 = vst [vmem:[%s4 + $0x28] sm:$0xff] %v373
    %424 = vst [vmem:[%s4 + $0x30] sm:$0xff] %v414
    %425 = vst [vmem:[%s4 + $0x38] sm:$0xff] %v416
    // Predicated region
    $region22: #{text_decoder_forward.1} parent=1 // pred_check
      _
    $region23: #{text_decoder_forward.1} parent=1 // pred_check_branch
      %427 = sbr.rel (0) target = $region25
    $region24: #{text_decoder_forward.1} parent=1 // pred_region
      _
    $region25: #{text_decoder_forward.1} parent=1 // pred_fallthru
      _
    // Predicated region
    $region26: #{text_decoder_forward.1} parent=1 // pred_check
      _
    $region27: #{text_decoder_forward.1} parent=1 // pred_check_branch
      %429 = sbr.rel (0) target = $region29
    $region28: #{text_decoder_forward.1} parent=1 // pred_region
      _
    $region29: #{text_decoder_forward.1} parent=1 // pred_fallthru
      _
    %430 = vsyncpa [#allocation3], 1

</llo_original>
